<compile_context>
chip_gen: v5e
topology: v5e:2x2
jax: 0.10.0
libtpu: 0.0.40
codegen_flags: <defaults>
</compile_context>

<pallas_src>
import jax
import jax.numpy as jnp
from jax.experimental import pallas as pl
from jax.experimental.pallas import tpu as pltpu


# ------------------------------- Pallas kernel ---------------------------------

def three_unit_kernel(x_ref, w1_ref, b1_ref, w2_ref, b2_ref, o_ref):
    D, H, WC = x_ref.shape          # lane-dense block: (D, H, W*C)
    DH = D * H
    x = x_ref[...].astype(jnp.float32).reshape(DH, WC)

    # Hoisted row-index masks (shared by both conv stages).
    r = jax.lax.broadcasted_iota(jnp.int32, (DH, 1), 0)
    h = r % H                              # h index of each row
    m_h_minus = h > 0                      # row r-1 is same-band, in range
    m_h_plus = h < H - 1                   # row r+1 is same-band, in range
    m_d_minus = r >= H                     # band d-1 exists
    m_d_plus = r < DH - H                  # band d+1 exists

    def shift(v, s, m):
        # out[row, :] = v[row + s, :] when the source row is valid (per m), else 0.
        return jnp.where(m, jnp.roll(v, -s, axis=0), 0.0)

    # ---- stage 1: spatial(1x3x3) + spectral(3x1x1) fused into one matmul ----
    # K-concat order must match the row order of w1 (see prepare_params).
    x_cat = jnp.concatenate(
        [x,                                # kh = 0 / kd = 0 (center taps)
         shift(x, -1, m_h_minus),          # kh = -1
         shift(x, +1, m_h_plus),           # kh = +1
         shift(x, -H, m_d_minus),          # kd = -1
         shift(x, +H, m_d_plus)],          # kd = +1
        axis=1)                            # (DH, 5*WC)
    y = jnp.dot(x_cat, w1_ref[...], preferred_element_type=jnp.float32) + b1_ref[...]
    y = jnp.maximum(y, 0.0)                # ReLU

    # ---- stage 2: spatial_one (1x3x3), one matmul ----
    y_cat = jnp.concatenate(
        [y, shift(y, -1, m_h_minus), shift(y, +1, m_h_plus)], axis=1)  # (DH, 3*WC)
    out = jnp.dot(y_cat, w2_ref[...], preferred_element_type=jnp.float32) + b2_ref[...]

    o_ref[...] = out.reshape(D, H, WC).astype(o_ref.dtype)


def three_unit_pallas(x_ncdhw, fp):
    """x_ncdhw: (N, C, D, H, W); fp: fused lane-space params from prepare_params."""
    N, C, D, H, W = x_ncdhw.shape
    WC = W * C
    # NCDHW -> NDHWC -> lane-dense (N, D, H, W*C)
    x = jnp.transpose(x_ncdhw, (0, 2, 3, 4, 1)).reshape(N, D, H, WC)

    out = pl.pallas_call(
        three_unit_kernel,
        out_shape=jax.ShapeDtypeStruct((N, D, H, WC), jnp.float32),
        grid=(N,),
        in_specs=[
            pl.BlockSpec((None, D, H, WC), lambda n: (n, 0, 0, 0)),
            pl.BlockSpec((5 * WC, WC), lambda n: (0, 0)),
            pl.BlockSpec((1, WC), lambda n: (0, 0)),
            pl.BlockSpec((3 * WC, WC), lambda n: (0, 0)),
            pl.BlockSpec((1, WC), lambda n: (0, 0)),
        ],
        out_specs=pl.BlockSpec((None, D, H, WC), lambda n: (n, 0, 0, 0)),
        compiler_params=pltpu.CompilerParams(
            dimension_semantics=("parallel",),
            vmem_limit_bytes=32 * 1024 * 1024),
    )(x, fp["w1"], fp["b1"], fp["w2"], fp["b2"])

    return jnp.transpose(out.reshape(N, D, H, W, C), (0, 4, 1, 2, 3))  # -> N C D H W


# --------------------- host-side weight preparation (plain JAX) ----------------

def _weight_norm(v, g):
    # PyTorch weight_norm(dim=0): w = g * v / ||v||, norm over all dims but dim 0.
    norm = jnp.sqrt(jnp.sum(v * v, axis=(1, 2, 3, 4), keepdims=True))
    return g.reshape(-1, 1, 1, 1, 1) * v / norm


def _band_matrix(w_kw, W):
    # w_kw: (3, C, C) taps over kw. Returns (W*C, W*C) with
    # M[(w+kw)*C + ci, w*C + co] = w_kw[kw+1, ci, co]  for 0 <= w+kw < W.
    M = None
    for kw in (-1, 0, 1):
        term = jnp.kron(jnp.eye(W, k=-kw, dtype=w_kw.dtype), w_kw[kw + 1])
        M = term if M is None else M + term
    return M


def _block_diag(b, W):
    # (C, C) block repeated W times on the diagonal -> (W*C, W*C).
    return jnp.kron(jnp.eye(W, dtype=b.dtype), b)


def prepare_params(tp, W):
    """tp: torch-layout params (weights (O,I,kd,kh,kw), biases (C,)).
    Builds the fused lane-space weights consumed by the Pallas kernel."""
    C = tp["b_spatial"].shape[0]
    # -> (kh, kw, ci, co) and (kd, ci, co)
    wsp = jnp.transpose(tp["w_spatial"][:, :, 0], (2, 3, 1, 0))
    wsp1 = jnp.transpose(tp["w_spatial_one"][:, :, 0], (2, 3, 1, 0))
    wspec = jnp.transpose(tp["w_spectral"][:, :, :, 0, 0], (2, 1, 0))

    sp_band = [_band_matrix(wsp[i], W) for i in range(3)]    # i = kh + 1
    sp1_band = [_band_matrix(wsp1[i], W) for i in range(3)]
    spec_bd = [_block_diag(wspec[i], W) for i in range(3)]   # i = kd + 1

    # Row order must match the in-kernel K-concat:
    # [center, kh=-1, kh=+1, kd=-1, kd=+1]
    w1 = jnp.concatenate([sp_band[1] + spec_bd[1],
                          sp_band[0], sp_band[2],
                          spec_bd[0], spec_bd[2]], axis=0)   # (5*W*C, W*C)
    w2 = jnp.concatenate([sp1_band[1], sp1_band[0], sp1_band[2]], axis=0)  # (3*W*C, W*C)

    b1 = jnp.tile(tp["b_spatial"] + tp["b_spectral"], W).reshape(1, W * C)
    b2 = jnp.tile(tp["b_spatial_one"], W).reshape(1, W * C)
    return {"w1": w1, "b1": b1, "w2": w2, "b2": b2}


def init_params(key, n_feats):
    C = n_feats
    ks = jax.random.split(key, 9)

    def make(kv, kg, kb, kshape):
        v = 0.1 * jax.random.normal(kv, (C, C) + kshape, jnp.float32)
        g = jax.random.uniform(kg, (C,), jnp.float32, minval=0.5, maxval=1.5)
        b = 0.1 * jax.random.normal(kb, (C,), jnp.float32)
        return _weight_norm(v, g), b

    w_sp, b_sp = make(ks[0], ks[1], ks[2], (1, 3, 3))      # torch layout (O,I,1,3,3)
    w_spec, b_spec = make(ks[3], ks[4], ks[5], (3, 1, 1))  # torch layout (O,I,3,1,1)
    w_sp1, b_sp1 = make(ks[6], ks[7], ks[8], (1, 3, 3))
    return {"w_spatial": w_sp, "b_spatial": b_sp,
            "w_spectral": w_spec, "b_spectral": b_spec,
            "w_spatial_one": w_sp1, "b_spatial_one": b_sp1}


# ----------------------- pure-JAX reference (for verification) ------------------

def _conv3d_ref(x, w, b, pad):
    out = jax.lax.conv_general_dilated(
        x, w, window_strides=(1, 1, 1),
        padding=[(pad[0], pad[0]), (pad[1], pad[1]), (pad[2], pad[2])],
        dimension_numbers=("NCDHW", "OIDHW", "NCDHW"))
    return out + b.reshape(1, -1, 1, 1, 1)


def three_unit_ref(x, tp):
    out = (_conv3d_ref(x, tp["w_spatial"], tp["b_spatial"], (0, 1, 1)) +
           _conv3d_ref(x, tp["w_spectral"], tp["b_spectral"], (1, 0, 0)))
    out = jnp.maximum(out, 0.0)
    return _conv3d_ref(out, tp["w_spatial_one"], tp["b_spatial_one"], (0, 1, 1))


if __name__ == "__main__":
    key = jax.random.PRNGKey(0)
    k_x, k_p = jax.random.split(key)

    N, C, D, H, W = 2, 8, 4, 16, 16        # batch, n_feats, bands, height, width
    x = jax.random.normal(k_x, (N, C, D, H, W), jnp.float32)

    torch_params = init_params(k_p, C)
    fused_params = prepare_params(torch_params, W)

    out = jax.block_until_ready(three_unit_pallas(x, fused_params))

    ref = three_unit_ref(x, torch_params)
    assert out.shape == ref.shape == (N, C, D, H, W)
    assert jnp.allclose(out, ref, atol=1e-3, rtol=1e-3), \
        f"max abs diff = {jnp.max(jnp.abs(out - ref))}"

    print("KERNEL_OK")
</pallas_src>

<mosaic_0001>
module attributes {stable_mosaic.version = 11 : i64} {
  func.func @three_unit_kernel(%arg0: i32, %arg1: memref<1x4x16x128xf32, #tpu.memory_space<vmem>>, %arg2: memref<640x128xf32, #tpu.memory_space<vmem>>, %arg3: memref<1x128xf32, #tpu.memory_space<vmem>>, %arg4: memref<384x128xf32, #tpu.memory_space<vmem>>, %arg5: memref<1x128xf32, #tpu.memory_space<vmem>>, %arg6: memref<1x4x16x128xf32, #tpu.memory_space<vmem>>) attributes {dimension_semantics = [#tpu.dimension_semantics<parallel>], iteration_bounds = array<i64: 2>, scalar_prefetch = 0 : i64, scratch_operands = 0 : i64, tpu.core_type = #tpu.core_type<tc>, window_params = [{transform_indices = @transform_0, window_bounds = array<i64: 1, 4, 16, 128>}, {pipeline_mode = #tpu.pipeline_mode<synchronous>, transform_indices = @transform_1, window_bounds = array<i64: 640, 128>}, {pipeline_mode = #tpu.pipeline_mode<synchronous>, transform_indices = @transform_2, window_bounds = array<i64: 1, 128>}, {pipeline_mode = #tpu.pipeline_mode<synchronous>, transform_indices = @transform_3, window_bounds = array<i64: 384, 128>}, {pipeline_mode = #tpu.pipeline_mode<synchronous>, transform_indices = @transform_4, window_bounds = array<i64: 1, 128>}, {transform_indices = @transform_5, window_bounds = array<i64: 1, 4, 16, 128>}]} {
    %c0 = arith.constant 0 : index
    %c0_0 = arith.constant 0 : index
    %c0_1 = arith.constant 0 : index
    %c0_2 = arith.constant 0 : index
    %0 = vector.load %arg1[%c0, %c0_0, %c0_1, %c0_2] : memref<1x4x16x128xf32, #tpu.memory_space<vmem>>, vector<1x4x16x128xf32>
    %1 = vector.shape_cast %0 : vector<1x4x16x128xf32> to vector<4x16x128xf32>
    %2 = vector.shape_cast %1 : vector<4x16x128xf32> to vector<64x128xf32>
    %3 = tpu.iota {dimensions = array<i32: 0>} : vector<64x1xi32>
    %c16_i32 = arith.constant 16 : i32
    %c0_i32 = arith.constant 0 : i32
    %4 = arith.cmpi eq, %c16_i32, %c0_i32 : i32
    %c1_i32 = arith.constant 1 : i32
    %5 = arith.select %4, %c1_i32, %c16_i32 : i32
    %6 = vector.broadcast %5 : i32 to vector<64x1xi32>
    %7 = arith.remsi %3, %6 : vector<64x1xi32>
    %c0_i32_3 = arith.constant 0 : i32
    %8 = vector.broadcast %c0_i32_3 : i32 to vector<64x1xi32>
    %9 = arith.cmpi ne, %7, %8 : vector<64x1xi32>
    %c0_i32_4 = arith.constant 0 : i32
    %10 = vector.broadcast %c0_i32_4 : i32 to vector<64x1xi32>
    %11 = arith.cmpi slt, %7, %10 : vector<64x1xi32>
    %c0_i32_5 = arith.constant 0 : i32
    %12 = arith.cmpi slt, %5, %c0_i32_5 : i32
    %13 = vector.broadcast %12 : i1 to vector<64x1xi1>
    %14 = vector.broadcast %13 : vector<64x1xi1> to vector<64x1xi1>
    %15 = arith.xori %11, %14 : vector<64x1xi1>
    %16 = arith.andi %15, %9 : vector<64x1xi1>
    %17 = vector.broadcast %5 : i32 to vector<64x1xi32>
    %18 = arith.addi %7, %17 : vector<64x1xi32>
    %19 = arith.select %16, %18, %7 : vector<64x1xi1>, vector<64x1xi32>
    %c0_i32_6 = arith.constant 0 : i32
    %20 = vector.broadcast %c0_i32_6 : i32 to vector<64x1xi32>
    %21 = arith.cmpi sgt, %19, %20 : vector<64x1xi32>
    %c15_i32 = arith.constant 15 : i32
    %22 = vector.broadcast %c15_i32 : i32 to vector<64x1xi32>
    %23 = arith.cmpi slt, %19, %22 : vector<64x1xi32>
    %c16_i32_7 = arith.constant 16 : i32
    %24 = vector.broadcast %c16_i32_7 : i32 to vector<64x1xi32>
    %25 = arith.cmpi sge, %3, %24 : vector<64x1xi32>
    %c48_i32 = arith.constant 48 : i32
    %26 = vector.broadcast %c48_i32 : i32 to vector<64x1xi32>
    %27 = arith.cmpi slt, %3, %26 : vector<64x1xi32>
    %28 = vector.extract_strided_slice %2 {offsets = [63, 0], sizes = [1, 128], strides = [1, 1]} : vector<64x128xf32> to vector<1x128xf32>
    %29 = vector.extract_strided_slice %2 {offsets = [0, 0], sizes = [63, 128], strides = [1, 1]} : vector<64x128xf32> to vector<63x128xf32>
    %30 = tpu.concatenate %28, %29 in 0 : vector<1x128xf32>, vector<63x128xf32> -> vector<64x128xf32>
    %cst = arith.constant 0.000000e+00 : f32
    %31 = vector.shape_cast %21 : vector<64x1xi1> to vector<64x1xi1>
    %32 = vector.broadcast %31 : vector<64x1xi1> to vector<64x128xi1>
    %33 = vector.broadcast %cst : f32 to vector<64x128xf32>
    %34 = arith.select %32, %30, %33 : vector<64x128xi1>, vector<64x128xf32>
    %35 = vector.extract_strided_slice %2 {offsets = [1, 0], sizes = [63, 128], strides = [1, 1]} : vector<64x128xf32> to vector<63x128xf32>
    %36 = vector.extract_strided_slice %2 {offsets = [0, 0], sizes = [1, 128], strides = [1, 1]} : vector<64x128xf32> to vector<1x128xf32>
    %37 = tpu.concatenate %35, %36 in 0 : vector<63x128xf32>, vector<1x128xf32> -> vector<64x128xf32>
    %cst_8 = arith.constant 0.000000e+00 : f32
    %38 = vector.shape_cast %23 : vector<64x1xi1> to vector<64x1xi1>
    %39 = vector.broadcast %38 : vector<64x1xi1> to vector<64x128xi1>
    %40 = vector.broadcast %cst_8 : f32 to vector<64x128xf32>
    %41 = arith.select %39, %37, %40 : vector<64x128xi1>, vector<64x128xf32>
    %42 = vector.extract_strided_slice %2 {offsets = [48, 0], sizes = [16, 128], strides = [1, 1]} : vector<64x128xf32> to vector<16x128xf32>
    %43 = vector.extract_strided_slice %2 {offsets = [0, 0], sizes = [48, 128], strides = [1, 1]} : vector<64x128xf32> to vector<48x128xf32>
    %44 = tpu.concatenate %42, %43 in 0 : vector<16x128xf32>, vector<48x128xf32> -> vector<64x128xf32>
    %cst_9 = arith.constant 0.000000e+00 : f32
    %45 = vector.shape_cast %25 : vector<64x1xi1> to vector<64x1xi1>
    %46 = vector.broadcast %45 : vector<64x1xi1> to vector<64x128xi1>
    %47 = vector.broadcast %cst_9 : f32 to vector<64x128xf32>
    %48 = arith.select %46, %44, %47 : vector<64x128xi1>, vector<64x128xf32>
    %49 = vector.extract_strided_slice %2 {offsets = [16, 0], sizes = [48, 128], strides = [1, 1]} : vector<64x128xf32> to vector<48x128xf32>
    %50 = vector.extract_strided_slice %2 {offsets = [0, 0], sizes = [16, 128], strides = [1, 1]} : vector<64x128xf32> to vector<16x128xf32>
    %51 = tpu.concatenate %49, %50 in 0 : vector<48x128xf32>, vector<16x128xf32> -> vector<64x128xf32>
    %cst_10 = arith.constant 0.000000e+00 : f32
    %52 = vector.shape_cast %27 : vector<64x1xi1> to vector<64x1xi1>
    %53 = vector.broadcast %52 : vector<64x1xi1> to vector<64x128xi1>
    %54 = vector.broadcast %cst_10 : f32 to vector<64x128xf32>
    %55 = arith.select %53, %51, %54 : vector<64x128xi1>, vector<64x128xf32>
    %56 = tpu.concatenate %2, %34, %41, %48, %55 in 1 : vector<64x128xf32>, vector<64x128xf32>, vector<64x128xf32>, vector<64x128xf32>, vector<64x128xf32> -> vector<64x640xf32>
    %c0_11 = arith.constant 0 : index
    %c0_12 = arith.constant 0 : index
    %57 = vector.load %arg2[%c0_11, %c0_12] : memref<640x128xf32, #tpu.memory_space<vmem>>, vector<640x128xf32>
    %cst_13 = arith.constant dense<0.000000e+00> : vector<64x128xf32>
    %58 = tpu.matmul %56, %57, %cst_13 {dimension_numbers = #tpu.dot_dimension_numbers<[1], [0], [0], [1], [0, 0, 1, 1], [], []>} : vector<64x640xf32>, vector<640x128xf32>, vector<64x128xf32> -> vector<64x128xf32>
    %c0_14 = arith.constant 0 : index
    %c0_15 = arith.constant 0 : index
    %59 = vector.load %arg3[%c0_14, %c0_15] : memref<1x128xf32, #tpu.memory_space<vmem>>, vector<1x128xf32>
    %60 = vector.broadcast %59 : vector<1x128xf32> to vector<64x128xf32>
    %61 = arith.addf %58, %60 : vector<64x128xf32>
    %cst_16 = arith.constant 0.000000e+00 : f32
    %62 = vector.broadcast %cst_16 : f32 to vector<64x128xf32>
    %63 = arith.maximumf %61, %62 : vector<64x128xf32>
    %64 = vector.extract_strided_slice %63 {offsets = [63, 0], sizes = [1, 128], strides = [1, 1]} : vector<64x128xf32> to vector<1x128xf32>
    %65 = vector.extract_strided_slice %63 {offsets = [0, 0], sizes = [63, 128], strides = [1, 1]} : vector<64x128xf32> to vector<63x128xf32>
    %66 = tpu.concatenate %64, %65 in 0 : vector<1x128xf32>, vector<63x128xf32> -> vector<64x128xf32>
    %cst_17 = arith.constant 0.000000e+00 : f32
    %67 = vector.shape_cast %21 : vector<64x1xi1> to vector<64x1xi1>
    %68 = vector.broadcast %67 : vector<64x1xi1> to vector<64x128xi1>
    %69 = vector.broadcast %cst_17 : f32 to vector<64x128xf32>
    %70 = arith.select %68, %66, %69 : vector<64x128xi1>, vector<64x128xf32>
    %71 = vector.extract_strided_slice %63 {offsets = [1, 0], sizes = [63, 128], strides = [1, 1]} : vector<64x128xf32> to vector<63x128xf32>
    %72 = vector.extract_strided_slice %63 {offsets = [0, 0], sizes = [1, 128], strides = [1, 1]} : vector<64x128xf32> to vector<1x128xf32>
    %73 = tpu.concatenate %71, %72 in 0 : vector<63x128xf32>, vector<1x128xf32> -> vector<64x128xf32>
    %cst_18 = arith.constant 0.000000e+00 : f32
    %74 = vector.shape_cast %23 : vector<64x1xi1> to vector<64x1xi1>
    %75 = vector.broadcast %74 : vector<64x1xi1> to vector<64x128xi1>
    %76 = vector.broadcast %cst_18 : f32 to vector<64x128xf32>
    %77 = arith.select %75, %73, %76 : vector<64x128xi1>, vector<64x128xf32>
    %78 = tpu.concatenate %63, %70, %77 in 1 : vector<64x128xf32>, vector<64x128xf32>, vector<64x128xf32> -> vector<64x384xf32>
    %c0_19 = arith.constant 0 : index
    %c0_20 = arith.constant 0 : index
    %79 = vector.load %arg4[%c0_19, %c0_20] : memref<384x128xf32, #tpu.memory_space<vmem>>, vector<384x128xf32>
    %cst_21 = arith.constant dense<0.000000e+00> : vector<64x128xf32>
    %80 = tpu.matmul %78, %79, %cst_21 {dimension_numbers = #tpu.dot_dimension_numbers<[1], [0], [0], [1], [0, 0, 1, 1], [], []>} : vector<64x384xf32>, vector<384x128xf32>, vector<64x128xf32> -> vector<64x128xf32>
    %c0_22 = arith.constant 0 : index
    %c0_23 = arith.constant 0 : index
    %81 = vector.load %arg5[%c0_22, %c0_23] : memref<1x128xf32, #tpu.memory_space<vmem>>, vector<1x128xf32>
    %82 = vector.broadcast %81 : vector<1x128xf32> to vector<64x128xf32>
    %83 = arith.addf %80, %82 : vector<64x128xf32>
    %84 = vector.shape_cast %83 : vector<64x128xf32> to vector<4x16x128xf32>
    %c0_24 = arith.constant 0 : index
    %c0_25 = arith.constant 0 : index
    %c0_26 = arith.constant 0 : index
    %c0_27 = arith.constant 0 : index
    %85 = vector.load %arg6[%c0_24, %c0_25, %c0_26, %c0_27] : memref<1x4x16x128xf32, #tpu.memory_space<vmem>>, vector<1x4x16x128xf32>
    %86 = vector.shape_cast %85 : vector<1x4x16x128xf32> to vector<4x16x128xf32>
    %87 = vector.shape_cast %84 : vector<4x16x128xf32> to vector<1x4x16x128xf32>
    tpu.vector_store %arg6[%c0_24, %c0_25, %c0_26, %c0_27], %87 {strides = array<i32>} : memref<1x4x16x128xf32, #tpu.memory_space<vmem>>, vector<1x4x16x128xf32>,
    return
  }
  func.func @transform_0(%arg0: i32) -> (i32, i32, i32, i32) {
    %c0_i32 = arith.constant 0 : i32
    %c0_i32_0 = arith.constant 0 : i32
    %c0_i32_1 = arith.constant 0 : i32
    %c0_i32_2 = arith.constant 0 : i32
    return %arg0, %c0_i32, %c0_i32_0, %c0_i32_1 : i32, i32, i32, i32
  }
  func.func @transform_1(%arg0: i32) -> (i32, i32) {
    %c0_i32 = arith.constant 0 : i32
    %c0_i32_0 = arith.constant 0 : i32
    %c0_i32_1 = arith.constant 0 : i32
    return %c0_i32, %c0_i32_0 : i32, i32
  }
  func.func @transform_2(%arg0: i32) -> (i32, i32) {
    %c0_i32 = arith.constant 0 : i32
    %c0_i32_0 = arith.constant 0 : i32
    %c0_i32_1 = arith.constant 0 : i32
    return %c0_i32, %c0_i32_0 : i32, i32
  }
  func.func @transform_3(%arg0: i32) -> (i32, i32) {
    %c0_i32 = arith.constant 0 : i32
    %c0_i32_0 = arith.constant 0 : i32
    %c0_i32_1 = arith.constant 0 : i32
    return %c0_i32, %c0_i32_0 : i32, i32
  }
  func.func @transform_4(%arg0: i32) -> (i32, i32) {
    %c0_i32 = arith.constant 0 : i32
    %c0_i32_0 = arith.constant 0 : i32
    %c0_i32_1 = arith.constant 0 : i32
    return %c0_i32, %c0_i32_0 : i32, i32
  }
  func.func @transform_5(%arg0: i32) -> (i32, i32, i32, i32) {
    %c0_i32 = arith.constant 0 : i32
    %c0_i32_0 = arith.constant 0 : i32
    %c0_i32_1 = arith.constant 0 : i32
    %c0_i32_2 = arith.constant 0 : i32
    return %arg0, %c0_i32, %c0_i32_0, %c0_i32_1 : i32, i32, i32, i32
  }
}

</mosaic_0001>

<llo_original>
// kernel: tpu_custom_call.1
$region0: #{tpu_custom_call.1}
  #allocation0 [shape = 'u32[]', space=smem, size = 0x4, offset = 0x4, fixed_abs, tag = 'smem constant byte address 0x4 - core index']
  #allocation1 [shape = 'u32[72,128]{1,0:T(1,128)}', space=vmem, size = 0x9000, scoped, tag = 'internal scratch']
  %s0 = inlined_call_operand.hbm [shape: f32[2,4,16,128], index: 0, kind: input, shape index: {}]
  %s1 = inlined_call_operand.hbm [shape: f32[640,128], index: 1, kind: input, shape index: {}]
  %s2 = inlined_call_operand.vmem [shape: f32[1,128], index: 2, kind: input, shape index: {}]
  %s3 = inlined_call_operand.hbm [shape: f32[384,128], index: 3, kind: input, shape index: {}]
  %s4 = inlined_call_operand.vmem [shape: f32[1,128], index: 4, kind: input, shape index: {}]
  %s5 = inlined_call_operand.hbm [shape: f32[2,4,16,128], index: 5, kind: output, shape index: {}]
  %s6 = sld [smem:[#allocation0]]
  $region65: #{tpu_custom_call.1} parent=0
    _
  %s8 = ssub.s32 1, %s6
  %s9 = scalar_select 0, %s8, %s6
  $region1: #{tpu_custom_call.1} parent=0
    #allocation2 [shape = 'u8[65536]{0}', space=vmem, size = 0x10000, scoped, tag = 'input window, operand 0']
    #allocation3 [shape = 's32[2]{0}', space=sflag, size = 0x8, scoped, tag = 'scoped memory for tpu_custom_call.1']
    #allocation4 [shape = 's32[2]{0}', space=sflag, size = 0x8, scoped, tag = 'scoped memory for tpu_custom_call.1']
    #allocation5 [shape = 'u8[327680]{0}', space=vmem, size = 0x50000, scoped, tag = 'input window, operand 1, single buffered']
    #allocation6 [shape = 's32[1]{0}', space=sflag, size = 0x4, scoped, tag = 'scoped memory for tpu_custom_call.1']
    #allocation7 [shape = 'u8[196608]{0}', space=vmem, size = 0x30000, scoped, tag = 'input window, operand 3, single buffered']
    #allocation8 [shape = 'u8[65536]{0}', space=vmem, size = 0x10000, scoped, tag = 'output window, operand 0']
    %10 = vsyncpa [#allocation3], 0
    %s11 = scalar_lea.sflag [#allocation3], 1
    %12 = vsyncpa %s11, 0
    %13 = vsyncpa [#allocation6], 0
    %14 = vsyncpa [#allocation4], 0
    %s15 = scalar_lea.sflag [#allocation4], 1
    %16 = vsyncpa %s15, 0
    loop: start=0, step=1, limit=4
    $region2: #{tpu_custom_call.1} parent=1 // loop_pre_header
      _
    $region3: #{tpu_custom_call.1} parent=1 // loop_header
      %s18 = sphi 0, %s22
      %p19 = scmp.ge.s32.totalorder %s18, 4
      %s28 = sphi 0, %s30
      %s31 = sphi 0, %s28
      %s32 = sphi 0, %s31
      %s48 = sphi 0, %s32
      %s52 = sphi 0, %s52
      %s54 = sphi 0, %s52
      %s55 = sphi 0, %s54
      %s69 = sphi 0, %s55
      %s73 = sphi 0, %s73
      %s75 = sphi 0, %s73
      %s76 = sphi 0, %s75
      %s90 = sphi 0, %s76
      %s94 = sphi 0, %s94
      %s96 = sphi 0, %s94
      %s97 = sphi 0, %s96
      %s111 = sphi 0, %s97
      %s115 = sphi 0, %s115
      %s117 = sphi 0, %s115
      %s118 = sphi 0, %s117
      %s132 = sphi 0, %s118
      %s138 = sphi 0, %s140
      %s141 = sphi 0, %s138
      %s142 = sphi 0, %s141
      %s158 = sphi 0, %s142
    $region4: #{tpu_custom_call.1} parent=1 // loop_header_branch
      %21 = sbr.rel (%p19) target = $region8
    $region5: #{tpu_custom_call.1} parent=1 // loop_body
      %s23 = ssub.s32 %s18, 1
      %s24 = ssub.s32 %s18, 2
      %s25 = sadd.s32 %s18, 1
      %s26 = ssub.s32 %s18, %s25
      %p27 = scmp.eq.s32.totalorder %s26, 0
      %s29 = sadd.s32 %s28, 1
      %s30 = scalar_select %p27, %s28, %s29
      %p33 = pneg %p27
      %p34 = scmp.eq.s32.totalorder %s18, 1
      %p35 = por %p33, %p34
      %p36 = scmp.ne.s32.totalorder %s28, %s31
      %p37 = scmp.eq.s32.totalorder %s18, 0
      %p38 = por %p36, %p37
      %p39 = scmp.ne.s32.totalorder %s28, %s31
      %p40 = scmp.eq.s32.totalorder %s23, 1
      %p41 = por %p39, %p40
      %p42 = scmp.ne.s32.totalorder %s31, %s32
      %p43 = scmp.eq.s32.totalorder %s23, 0
      %p44 = por %p42, %p43
      %p45 = scmp.ne.s32.totalorder %s31, %s32
      %p46 = scmp.eq.s32.totalorder %s24, 1
      %p47 = por %p45, %p46
      %p49 = scmp.ne.s32.totalorder %s32, %s48
      %p50 = scmp.eq.s32.totalorder %s24, 0
      %p51 = por %p49, %p50
      %s53 = sadd.s32 %s52, 1
      %p56 = scmp.eq.s32.totalorder %s18, 1
      %p57 = scmp.ne.s32.totalorder %s52, %s54
      %p58 = scmp.eq.s32.totalorder %s18, 0
      %p59 = por %p57, %p58
      %p60 = scmp.ne.s32.totalorder %s52, %s54
      %p61 = scmp.eq.s32.totalorder %s23, 1
      %p62 = por %p60, %p61
      %p63 = scmp.ne.s32.totalorder %s54, %s55
      %p64 = scmp.eq.s32.totalorder %s23, 0
      %p65 = por %p63, %p64
      %p66 = scmp.ne.s32.totalorder %s54, %s55
      %p67 = scmp.eq.s32.totalorder %s24, 1
      %p68 = por %p66, %p67
      %p70 = scmp.ne.s32.totalorder %s55, %s69
      %p71 = scmp.eq.s32.totalorder %s24, 0
      %p72 = por %p70, %p71
      %s74 = sadd.s32 %s73, 1
      %p77 = scmp.eq.s32.totalorder %s18, 1
      %p78 = scmp.ne.s32.totalorder %s73, %s75
      %p79 = scmp.eq.s32.totalorder %s18, 0
      %p80 = por %p78, %p79
      %p81 = scmp.ne.s32.totalorder %s73, %s75
      %p82 = scmp.eq.s32.totalorder %s23, 1
      %p83 = por %p81, %p82
      %p84 = scmp.ne.s32.totalorder %s75, %s76
      %p85 = scmp.eq.s32.totalorder %s23, 0
      %p86 = por %p84, %p85
      %p87 = scmp.ne.s32.totalorder %s75, %s76
      %p88 = scmp.eq.s32.totalorder %s24, 1
      %p89 = por %p87, %p88
      %p91 = scmp.ne.s32.totalorder %s76, %s90
      %p92 = scmp.eq.s32.totalorder %s24, 0
      %p93 = por %p91, %p92
      %s95 = sadd.s32 %s94, 1
      %p98 = scmp.eq.s32.totalorder %s18, 1
      %p99 = scmp.ne.s32.totalorder %s94, %s96
      %p100 = scmp.eq.s32.totalorder %s18, 0
      %p101 = por %p99, %p100
      %p102 = scmp.ne.s32.totalorder %s94, %s96
      %p103 = scmp.eq.s32.totalorder %s23, 1
      %p104 = por %p102, %p103
      %p105 = scmp.ne.s32.totalorder %s96, %s97
      %p106 = scmp.eq.s32.totalorder %s23, 0
      %p107 = por %p105, %p106
      %p108 = scmp.ne.s32.totalorder %s96, %s97
      %p109 = scmp.eq.s32.totalorder %s24, 1
      %p110 = por %p108, %p109
      %p112 = scmp.ne.s32.totalorder %s97, %s111
      %p113 = scmp.eq.s32.totalorder %s24, 0
      %p114 = por %p112, %p113
      %s116 = sadd.s32 %s115, 1
      %p119 = scmp.eq.s32.totalorder %s18, 1
      %p120 = scmp.ne.s32.totalorder %s115, %s117
      %p121 = scmp.eq.s32.totalorder %s18, 0
      %p122 = por %p120, %p121
      %p123 = scmp.ne.s32.totalorder %s115, %s117
      %p124 = scmp.eq.s32.totalorder %s23, 1
      %p125 = por %p123, %p124
      %p126 = scmp.ne.s32.totalorder %s117, %s118
      %p127 = scmp.eq.s32.totalorder %s23, 0
      %p128 = por %p126, %p127
      %p129 = scmp.ne.s32.totalorder %s117, %s118
      %p130 = scmp.eq.s32.totalorder %s24, 1
      %p131 = por %p129, %p130
      %p133 = scmp.ne.s32.totalorder %s118, %s132
      %p134 = scmp.eq.s32.totalorder %s24, 0
      %p135 = por %p133, %p134
      %s136 = ssub.s32 %s18, %s25
      %p137 = scmp.eq.s32.totalorder %s136, 0
      %s139 = sadd.s32 %s138, 1
      %s140 = scalar_select %p137, %s138, %s139
      %p143 = pneg %p137
      %p144 = scmp.eq.s32.totalorder %s18, 1
      %p145 = por %p143, %p144
      %p146 = scmp.ne.s32.totalorder %s138, %s141
      %p147 = scmp.eq.s32.totalorder %s18, 0
      %p148 = por %p146, %p147
      %p149 = scmp.ne.s32.totalorder %s138, %s141
      %p150 = scmp.eq.s32.totalorder %s23, 1
      %p151 = por %p149, %p150
      %p152 = scmp.ne.s32.totalorder %s141, %s142
      %p153 = scmp.eq.s32.totalorder %s23, 0
      %p154 = por %p152, %p153
      %p155 = scmp.ne.s32.totalorder %s141, %s142
      %p156 = scmp.eq.s32.totalorder %s24, 1
      %p157 = por %p155, %p156
      %p159 = scmp.ne.s32.totalorder %s142, %s158
      %p160 = scmp.eq.s32.totalorder %s24, 0
      %p161 = por %p159, %p160
      %p162 = scmp.le.s32.totalorder 1, %s18
      %p163 = scmp.lt.s32.totalorder %s18, 3
      %p164 = pnand %p162, %p163
      %p165 = pneg %p164
      // Predicated region
      $region9: #{tpu_custom_call.1} parent=5 // pred_check
        _
      $region10: #{tpu_custom_call.1} parent=5 // pred_check_branch
        %167 = sbr.rel (%p164) target = $region12
      $region11: #{tpu_custom_call.1} parent=5 // pred_region
        %s168 = ssub.s32 %s18, 1
        // Predicated region
        $region13: #{tpu_custom_call.1} parent=11 // pred_check
          %p169 = pneg %p65
        $region14: #{tpu_custom_call.1} parent=11 // pred_check_branch
          %171 = sbr.rel (%p169) target = $region16
        $region15: #{tpu_custom_call.1} parent=11 // pred_region
          %173 = vsyncadd [#allocation6], 0
          %s174 = sshll.u32 %s1, 4
          %s175 = int_to_ptr.hbm [resolvable:$true] %s174
          %s176 = sshll.u32 [#allocation5], 4
          %s177 = int_to_ptr.vmem [resolvable:$true] %s176
          %182 = dma.hbm_to_vmem [thread:$0]  %s175, 10240, %s177, [#allocation6], 128, 128, 8
        $region16: #{tpu_custom_call.1} parent=11 // pred_fallthru
          _
        // Predicated region
        $region17: #{tpu_custom_call.1} parent=11 // pred_check
          %p183 = pneg %p86
        $region18: #{tpu_custom_call.1} parent=11 // pred_check_branch
          %185 = sbr.rel (%p183) target = $region20
        $region19: #{tpu_custom_call.1} parent=11 // pred_region
          _
        $region20: #{tpu_custom_call.1} parent=11 // pred_fallthru
          _
        // Predicated region
        $region21: #{tpu_custom_call.1} parent=11 // pred_check
          %p186 = pneg %p107
        $region22: #{tpu_custom_call.1} parent=11 // pred_check_branch
          %188 = sbr.rel (%p186) target = $region24
        $region23: #{tpu_custom_call.1} parent=11 // pred_region
          %190 = vsyncadd [#allocation6], 0
          %s191 = sshll.u32 %s3, 4
          %s192 = int_to_ptr.hbm [resolvable:$true] %s191
          %s193 = sshll.u32 [#allocation7], 4
          %s194 = int_to_ptr.vmem [resolvable:$true] %s193
          %199 = dma.hbm_to_vmem [thread:$0]  %s192, 6144, %s194, [#allocation6], 128, 128, 8
        $region24: #{tpu_custom_call.1} parent=11 // pred_fallthru
          _
        // Predicated region
        $region25: #{tpu_custom_call.1} parent=11 // pred_check
          %p200 = pneg %p128
        $region26: #{tpu_custom_call.1} parent=11 // pred_check_branch
          %202 = sbr.rel (%p200) target = $region28
        $region27: #{tpu_custom_call.1} parent=11 // pred_region
          _
        $region28: #{tpu_custom_call.1} parent=11 // pred_fallthru
          _
      $region12: #{tpu_custom_call.1} parent=5 // pred_fallthru
        _
      %p203 = scmp.lt.s32.totalorder %s18, 2
      // Predicated region
      $region29: #{tpu_custom_call.1} parent=5 // pred_check
        %p204 = pneg %p203
      $region30: #{tpu_custom_call.1} parent=5 // pred_check_branch
        %206 = sbr.rel (%p204) target = $region32
      $region31: #{tpu_custom_call.1} parent=5 // pred_region
        // Predicated region
        $region33: #{tpu_custom_call.1} parent=31 // pred_check
          %p207 = pneg %p38
        $region34: #{tpu_custom_call.1} parent=31 // pred_check_branch
          %209 = sbr.rel (%p207) target = $region36
        $region35: #{tpu_custom_call.1} parent=31 // pred_region
          %s210 = sand.u32 %s28, 1
          %s211 = scalar_lea.sflag [#allocation3], %s210
          %s212 = sand.u32 %s28, 1
          %s213 = smul.addr %s212, 64
          %s214 = scalar_lea.vmem [#allocation2], %s213
          %216 = vsyncadd %s211, 0
          %s217 = smul.addr %s18, 8
          %s218 = smul.addr %s217, 8
          %s219 = scalar_lea.hbm %s0, %s218
          %s220 = sshll.u32 %s219, 4
          %s221 = int_to_ptr.hbm [resolvable:$true] %s220
          %s222 = sshll.u32 %s214, 4
          %s223 = int_to_ptr.vmem [resolvable:$true] %s222
          %228 = dma.hbm_to_vmem [thread:$0]  %s221, 1024, %s223, %s211, 128, 128, 8
        $region36: #{tpu_custom_call.1} parent=31 // pred_fallthru
          _
      $region32: #{tpu_custom_call.1} parent=5 // pred_fallthru
        _
      %p229 = scmp.le.s32.totalorder 1, %s18
      %p230 = scmp.lt.s32.totalorder %s18, 3
      %p231 = pnand %p229, %p230
      %p232 = pneg %p231
      // Predicated region
      $region37: #{tpu_custom_call.1} parent=5 // pred_check
        _
      $region38: #{tpu_custom_call.1} parent=5 // pred_check_branch
        %234 = sbr.rel (%p231) target = $region40
      $region39: #{tpu_custom_call.1} parent=5 // pred_region
        %s235 = ssub.s32 %s18, 1
        %s236 = sand.u32 %s31, 1
        %s237 = scalar_lea.sflag [#allocation3], %s236
        %s238 = sand.u32 %s31, 1
        %s239 = smul.addr %s238, 64
        %s240 = scalar_lea.vmem [#allocation2], %s239
        // Predicated region
        $region41: #{tpu_custom_call.1} parent=39 // pred_check
          %p241 = pneg %p44
        $region42: #{tpu_custom_call.1} parent=39 // pred_check_branch
          %243 = sbr.rel (%p241) target = $region44
        $region43: #{tpu_custom_call.1} parent=39 // pred_region
          %245 = dma.done %s237, 1024
        $region44: #{tpu_custom_call.1} parent=39 // pred_fallthru
          _
        // Predicated region
        $region45: #{tpu_custom_call.1} parent=39 // pred_check
          %p246 = pneg %p65
        $region46: #{tpu_custom_call.1} parent=39 // pred_check_branch
          %248 = sbr.rel (%p246) target = $region48
        $region47: #{tpu_custom_call.1} parent=39 // pred_region
          %250 = dma.done [#allocation6], 10240
        $region48: #{tpu_custom_call.1} parent=39 // pred_fallthru
          _
        // Predicated region
        $region49: #{tpu_custom_call.1} parent=39 // pred_check
          %p251 = pneg %p107
        $region50: #{tpu_custom_call.1} parent=39 // pred_check_branch
          %253 = sbr.rel (%p251) target = $region52
        $region51: #{tpu_custom_call.1} parent=39 // pred_region
          %255 = dma.done [#allocation6], 6144
        $region52: #{tpu_custom_call.1} parent=39 // pred_fallthru
          _
        %s256 = sand.u32 %s31, 1
        %s257 = scalar_lea.sflag [#allocation3], %s256
        %s258 = sand.u32 %s31, 1
        %s259 = smul.addr %s258, 64
        %s260 = scalar_lea.vmem [#allocation2], %s259
        %p261 = pneg %p44
        %p262 = pneg %p41
        %p263 = pneg %p65
        %p264 = pneg %p62
        %p265 = pneg %p86
        %p266 = pneg %p83
        %p267 = pneg %p107
        %p268 = pneg %p104
        %p269 = pneg %p128
        %p270 = pneg %p125
        %p271 = pneg %p154
        %p272 = pneg %p151
        %s273 = sand.u32 %s141, 1
        %s274 = scalar_lea.sflag [#allocation4], %s273
        %s275 = sand.u32 %s141, 1
        %s276 = smul.addr %s275, 64
        %s277 = scalar_lea.vmem [#allocation8], %s276
        %v278 = vld [vmem:[%s240] sm:$0xff]
        %v279 = vld [vmem:[%s240 + $0x8] sm:$0xff]
        %v280 = vld [vmem:[%s240 + $0x10] sm:$0xff]
        %v281 = vld [vmem:[%s240 + $0x18] sm:$0xff]
        %v282 = vld [vmem:[%s240 + $0x20] sm:$0xff]
        %v283 = vld [vmem:[%s240 + $0x28] sm:$0xff]
        %v284 = vld [vmem:[%s240 + $0x30] sm:$0xff]
        %v285 = vld [vmem:[%s240 + $0x38] sm:$0xff]
        %v286 = vlaneseq
        %v287 = vshrl.u32 %v286, 7
        %v288 = vadd.s32 %v287, 8
        %v289 = vadd.s32 %v287, 16
        %v290 = vadd.s32 %v287, 24
        %v291 = vadd.s32 %v287, 32
        %v292 = vadd.s32 %v287, 40
        %v293 = vadd.s32 %v287, 48
        %v294 = vadd.s32 %v287, 56
        %vm295 = vcmp.lt.s32.totalorder %v287, 0
        %v296 = vsub.s32 0, %v287
        %v297 = vsel %vm295, %v296, %v287
        %v298 = vshrl.u32 %v297, 4
        %v299 = vand.u32 %v297, 15
        %v300 = vsub.s32 0, %v299
        %v301 = vsel %vm295, %v300, %v299
        %vm302 = vcmp.lt.s32.totalorder %v288, 0
        %v303 = vsub.s32 0, %v288
        %v304 = vsel %vm302, %v303, %v288
        %v305 = vshrl.u32 %v304, 4
        %v306 = vand.u32 %v304, 15
        %v307 = vsub.s32 0, %v306
        %v308 = vsel %vm302, %v307, %v306
        %vm309 = vcmp.lt.s32.totalorder %v289, 0
        %v310 = vsub.s32 0, %v289
        %v311 = vsel %vm309, %v310, %v289
        %v312 = vshrl.u32 %v311, 4
        %v313 = vand.u32 %v311, 15
        %v314 = vsub.s32 0, %v313
        %v315 = vsel %vm309, %v314, %v313
        %vm316 = vcmp.lt.s32.totalorder %v290, 0
        %v317 = vsub.s32 0, %v290
        %v318 = vsel %vm316, %v317, %v290
        %v319 = vshrl.u32 %v318, 4
        %v320 = vand.u32 %v318, 15
        %v321 = vsub.s32 0, %v320
        %v322 = vsel %vm316, %v321, %v320
        %vm323 = vcmp.lt.s32.totalorder %v291, 0
        %v324 = vsub.s32 0, %v291
        %v325 = vsel %vm323, %v324, %v291
        %v326 = vshrl.u32 %v325, 4
        %v327 = vand.u32 %v325, 15
        %v328 = vsub.s32 0, %v327
        %v329 = vsel %vm323, %v328, %v327
        %vm330 = vcmp.lt.s32.totalorder %v292, 0
        %v331 = vsub.s32 0, %v292
        %v332 = vsel %vm330, %v331, %v292
        %v333 = vshrl.u32 %v332, 4
        %v334 = vand.u32 %v332, 15
        %v335 = vsub.s32 0, %v334
        %v336 = vsel %vm330, %v335, %v334
        %vm337 = vcmp.lt.s32.totalorder %v293, 0
        %v338 = vsub.s32 0, %v293
        %v339 = vsel %vm337, %v338, %v293
        %v340 = vshrl.u32 %v339, 4
        %v341 = vand.u32 %v339, 15
        %v342 = vsub.s32 0, %v341
        %v343 = vsel %vm337, %v342, %v341
        %vm344 = vcmp.lt.s32.totalorder %v294, 0
        %v345 = vsub.s32 0, %v294
        %v346 = vsel %vm344, %v345, %v294
        %v347 = vshrl.u32 %v346, 4
        %v348 = vand.u32 %v346, 15
        %v349 = vsub.s32 0, %v348
        %v350 = vsel %vm344, %v349, %v348
        %vm351 = vcmp.ne.s32.totalorder %v301, 0
        %vm352 = vcmp.ne.s32.totalorder %v308, 0
        %vm353 = vcmp.ne.s32.totalorder %v315, 0
        %vm354 = vcmp.ne.s32.totalorder %v322, 0
        %vm355 = vcmp.ne.s32.totalorder %v329, 0
        %vm356 = vcmp.ne.s32.totalorder %v336, 0
        %vm357 = vcmp.ne.s32.totalorder %v343, 0
        %vm358 = vcmp.ne.s32.totalorder %v350, 0
        %vm359 = vcmp.lt.s32.totalorder %v301, 0
        %vm360 = vcmp.lt.s32.totalorder %v308, 0
        %vm361 = vcmp.lt.s32.totalorder %v315, 0
        %vm362 = vcmp.lt.s32.totalorder %v322, 0
        %vm363 = vcmp.lt.s32.totalorder %v329, 0
        %vm364 = vcmp.lt.s32.totalorder %v336, 0
        %vm365 = vcmp.lt.s32.totalorder %v343, 0
        %vm366 = vcmp.lt.s32.totalorder %v350, 0
        %vm367 = vmand %vm359, %vm351
        %vm368 = vmand %vm360, %vm352
        %vm369 = vmand %vm361, %vm353
        %vm370 = vmand %vm362, %vm354
        %vm371 = vmand %vm363, %vm355
        %vm372 = vmand %vm364, %vm356
        %vm373 = vmand %vm365, %vm357
        %vm374 = vmand %vm366, %vm358
        %v375 = vadd.s32 %v301, 16
        %v376 = vadd.s32 %v308, 16
        %v377 = vadd.s32 %v315, 16
        %v378 = vadd.s32 %v322, 16
        %v379 = vadd.s32 %v329, 16
        %v380 = vadd.s32 %v336, 16
        %v381 = vadd.s32 %v343, 16
        %v382 = vadd.s32 %v350, 16
        %v383 = vsel %vm367, %v375, %v301
        %v384 = vsel %vm368, %v376, %v308
        %v385 = vsel %vm369, %v377, %v315
        %v386 = vsel %vm370, %v378, %v322
        %v387 = vsel %vm371, %v379, %v329
        %v388 = vsel %vm372, %v380, %v336
        %v389 = vsel %vm373, %v381, %v343
        %v390 = vsel %vm374, %v382, %v350
        %vm391 = vcmp.gt.s32.totalorder %v383, 0
        %vm392 = vcmp.gt.s32.totalorder %v384, 0
        %vm393 = vcmp.gt.s32.totalorder %v385, 0
        %vm394 = vcmp.gt.s32.totalorder %v386, 0
        %vm395 = vcmp.gt.s32.totalorder %v387, 0
        %vm396 = vcmp.gt.s32.totalorder %v388, 0
        %vm397 = vcmp.gt.s32.totalorder %v389, 0
        %vm398 = vcmp.gt.s32.totalorder %v390, 0
        %vm399 = vcmp.lt.s32.totalorder %v383, 15
        %vm400 = vcmp.lt.s32.totalorder %v384, 15
        %vm401 = vcmp.lt.s32.totalorder %v385, 15
        %vm402 = vcmp.lt.s32.totalorder %v386, 15
        %vm403 = vcmp.lt.s32.totalorder %v387, 15
        %vm404 = vcmp.lt.s32.totalorder %v388, 15
        %vm405 = vcmp.lt.s32.totalorder %v389, 15
        %vm406 = vcmp.lt.s32.totalorder %v390, 15
        %vm407 = vcmp.ge.s32.totalorder %v287, 16
        %vm408 = vcmp.ge.s32.totalorder %v288, 16
        %vm409 = vcmp.ge.s32.totalorder %v289, 16
        %vm410 = vcmp.ge.s32.totalorder %v290, 16
        %vm411 = vcmp.ge.s32.totalorder %v291, 16
        %vm412 = vcmp.ge.s32.totalorder %v292, 16
        %vm413 = vcmp.ge.s32.totalorder %v293, 16
        %vm414 = vcmp.ge.s32.totalorder %v294, 16
        %vm415 = vcmp.lt.s32.totalorder %v287, 48
        %vm416 = vcmp.lt.s32.totalorder %v288, 48
        %vm417 = vcmp.lt.s32.totalorder %v289, 48
        %vm418 = vcmp.lt.s32.totalorder %v290, 48
        %vm419 = vcmp.lt.s32.totalorder %v291, 48
        %vm420 = vcmp.lt.s32.totalorder %v292, 48
        %vm421 = vcmp.lt.s32.totalorder %v293, 48
        %vm422 = vcmp.lt.s32.totalorder %v294, 48
        %v424 = vrot.slane %v285, 7
        %vm433 = vcmask 1040384
        %v434 = vrot.slane %v278, 7
        %v435 = vrot.slane %v279, 7
        %v436 = vsel %vm433, %v434, %v435
        %v437 = vrot.slane %v280, 7
        %v438 = vsel %vm433, %v435, %v437
        %v439 = vrot.slane %v281, 7
        %v440 = vsel %vm433, %v437, %v439
        %v441 = vrot.slane %v282, 7
        %v442 = vsel %vm433, %v439, %v441
        %v443 = vrot.slane %v283, 7
        %v444 = vsel %vm433, %v441, %v443
        %v445 = vrot.slane %v284, 7
        %v446 = vsel %vm433, %v443, %v445
        %v447 = vsel %vm433, %v445, %v424
        %v456 = vsel %vm433, %v424, %v434
        %v457 = vsel %vm391, 1, 0
        %v458 = vsel %vm392, 1, 0
        %v459 = vsel %vm393, 1, 0
        %v460 = vsel %vm394, 1, 0
        %v461 = vsel %vm395, 1, 0
        %v462 = vsel %vm396, 1, 0
        %v463 = vsel %vm397, 1, 0
        %v464 = vsel %vm398, 1, 0
        %vm465 = vcmp.eq.s32.totalorder %v457, 1
        %vm466 = vcmp.eq.s32.totalorder %v458, 1
        %vm467 = vcmp.eq.s32.totalorder %v459, 1
        %vm468 = vcmp.eq.s32.totalorder %v460, 1
        %vm469 = vcmp.eq.s32.totalorder %v461, 1
        %vm470 = vcmp.eq.s32.totalorder %v462, 1
        %vm471 = vcmp.eq.s32.totalorder %v463, 1
        %vm472 = vcmp.eq.s32.totalorder %v464, 1
        %v473 = vsel %vm465, %v456, 0.0
        %v474 = vsel %vm466, %v436, 0.0
        %v475 = vsel %vm467, %v438, 0.0
        %v476 = vsel %vm468, %v440, 0.0
        %v477 = vsel %vm469, %v442, 0.0
        %v478 = vsel %vm470, %v444, 0.0
        %v479 = vsel %vm471, %v446, 0.0
        %v480 = vsel %vm472, %v447, 0.0
        %vm481 = vcmask 1046528
        %v482 = vrot.slane %v278, 1
        %v483 = vrot.slane %v279, 1
        %v484 = vsel %vm481, %v482, %v483
        %v485 = vrot.slane %v280, 1
        %v486 = vsel %vm481, %v483, %v485
        %v487 = vrot.slane %v281, 1
        %v488 = vsel %vm481, %v485, %v487
        %v489 = vrot.slane %v282, 1
        %v490 = vsel %vm481, %v487, %v489
        %v491 = vrot.slane %v283, 1
        %v492 = vsel %vm481, %v489, %v491
        %v493 = vrot.slane %v284, 1
        %v494 = vsel %vm481, %v491, %v493
        %v495 = vrot.slane %v285, 1
        %v496 = vsel %vm481, %v493, %v495
        %v506 = vsel %vm481, %v495, %v482
        %v507 = vsel %vm399, 1, 0
        %v508 = vsel %vm400, 1, 0
        %v509 = vsel %vm401, 1, 0
        %v510 = vsel %vm402, 1, 0
        %v511 = vsel %vm403, 1, 0
        %v512 = vsel %vm404, 1, 0
        %v513 = vsel %vm405, 1, 0
        %v514 = vsel %vm406, 1, 0
        %vm515 = vcmp.eq.s32.totalorder %v507, 1
        %vm516 = vcmp.eq.s32.totalorder %v508, 1
        %vm517 = vcmp.eq.s32.totalorder %v509, 1
        %vm518 = vcmp.eq.s32.totalorder %v510, 1
        %vm519 = vcmp.eq.s32.totalorder %v511, 1
        %vm520 = vcmp.eq.s32.totalorder %v512, 1
        %vm521 = vcmp.eq.s32.totalorder %v513, 1
        %vm522 = vcmp.eq.s32.totalorder %v514, 1
        %v523 = vsel %vm515, %v484, 0.0
        %v524 = vsel %vm516, %v486, 0.0
        %v525 = vsel %vm517, %v488, 0.0
        %v526 = vsel %vm518, %v490, 0.0
        %v527 = vsel %vm519, %v492, 0.0
        %v528 = vsel %vm520, %v494, 0.0
        %v529 = vsel %vm521, %v496, 0.0
        %v530 = vsel %vm522, %v506, 0.0
        %v531 = vsel %vm407, 1, 0
        %v532 = vsel %vm408, 1, 0
        %v533 = vsel %vm409, 1, 0
        %v534 = vsel %vm410, 1, 0
        %v535 = vsel %vm411, 1, 0
        %v536 = vsel %vm412, 1, 0
        %v537 = vsel %vm413, 1, 0
        %v538 = vsel %vm414, 1, 0
        %vm539 = vcmp.eq.s32.totalorder %v531, 1
        %vm540 = vcmp.eq.s32.totalorder %v532, 1
        %vm541 = vcmp.eq.s32.totalorder %v533, 1
        %vm542 = vcmp.eq.s32.totalorder %v534, 1
        %vm543 = vcmp.eq.s32.totalorder %v535, 1
        %vm544 = vcmp.eq.s32.totalorder %v536, 1
        %vm545 = vcmp.eq.s32.totalorder %v537, 1
        %vm546 = vcmp.eq.s32.totalorder %v538, 1
        %v547 = vsel %vm539, %v284, 0.0
        %v548 = vsel %vm540, %v285, 0.0
        %v549 = vsel %vm541, %v278, 0.0
        %v550 = vsel %vm542, %v279, 0.0
        %v551 = vsel %vm543, %v280, 0.0
        %v552 = vsel %vm544, %v281, 0.0
        %v553 = vsel %vm545, %v282, 0.0
        %v554 = vsel %vm546, %v283, 0.0
        %v555 = vsel %vm415, 1, 0
        %v556 = vsel %vm416, 1, 0
        %v557 = vsel %vm417, 1, 0
        %v558 = vsel %vm418, 1, 0
        %v559 = vsel %vm419, 1, 0
        %v560 = vsel %vm420, 1, 0
        %v561 = vsel %vm421, 1, 0
        %v562 = vsel %vm422, 1, 0
        %vm563 = vcmp.eq.s32.totalorder %v555, 1
        %vm564 = vcmp.eq.s32.totalorder %v556, 1
        %vm565 = vcmp.eq.s32.totalorder %v557, 1
        %vm566 = vcmp.eq.s32.totalorder %v558, 1
        %vm567 = vcmp.eq.s32.totalorder %v559, 1
        %vm568 = vcmp.eq.s32.totalorder %v560, 1
        %vm569 = vcmp.eq.s32.totalorder %v561, 1
        %vm570 = vcmp.eq.s32.totalorder %v562, 1
        %v571 = vsel %vm563, %v280, 0.0
        %v572 = vsel %vm564, %v281, 0.0
        %v573 = vsel %vm565, %v282, 0.0
        %v574 = vsel %vm566, %v283, 0.0
        %v575 = vsel %vm567, %v284, 0.0
        %v576 = vsel %vm568, %v285, 0.0
        %v577 = vsel %vm569, %v278, 0.0
        %v578 = vsel %vm570, %v279, 0.0
        %v579 = vld [vmem:[#allocation5] sm:$0xff]
        %v580 = vld [vmem:[#allocation5 + $0x8] sm:$0xff]
        %v581 = vld [vmem:[#allocation5 + $0x10] sm:$0xff]
        %v582 = vld [vmem:[#allocation5 + $0x18] sm:$0xff]
        %v583 = vld [vmem:[#allocation5 + $0x20] sm:$0xff]
        %v584 = vld [vmem:[#allocation5 + $0x28] sm:$0xff]
        %v585 = vld [vmem:[#allocation5 + $0x30] sm:$0xff]
        %v586 = vld [vmem:[#allocation5 + $0x38] sm:$0xff]
        %v587 = vld [vmem:[#allocation5 + $0x40] sm:$0xff]
        %v588 = vld [vmem:[#allocation5 + $0x48] sm:$0xff]
        %v589 = vld [vmem:[#allocation5 + $0x50] sm:$0xff]
        %v590 = vld [vmem:[#allocation5 + $0x58] sm:$0xff]
        %v591 = vld [vmem:[#allocation5 + $0x60] sm:$0xff]
        %v592 = vld [vmem:[#allocation5 + $0x68] sm:$0xff]
        %v593 = vld [vmem:[#allocation5 + $0x70] sm:$0xff]
        %v594 = vld [vmem:[#allocation5 + $0x78] sm:$0xff]
        %v595 = vld [vmem:[#allocation5 + $0x80] sm:$0xff]
        %v596 = vld [vmem:[#allocation5 + $0x88] sm:$0xff]
        %v597 = vld [vmem:[#allocation5 + $0x90] sm:$0xff]
        %v598 = vld [vmem:[#allocation5 + $0x98] sm:$0xff]
        %v599 = vld [vmem:[#allocation5 + $0xa0] sm:$0xff]
        %v600 = vld [vmem:[#allocation5 + $0xa8] sm:$0xff]
        %v601 = vld [vmem:[#allocation5 + $0xb0] sm:$0xff]
        %v602 = vld [vmem:[#allocation5 + $0xb8] sm:$0xff]
        %v603 = vld [vmem:[#allocation5 + $0xc0] sm:$0xff]
        %v604 = vld [vmem:[#allocation5 + $0xc8] sm:$0xff]
        %v605 = vld [vmem:[#allocation5 + $0xd0] sm:$0xff]
        %v606 = vld [vmem:[#allocation5 + $0xd8] sm:$0xff]
        %v607 = vld [vmem:[#allocation5 + $0xe0] sm:$0xff]
        %v608 = vld [vmem:[#allocation5 + $0xe8] sm:$0xff]
        %v609 = vld [vmem:[#allocation5 + $0xf0] sm:$0xff]
        %v610 = vld [vmem:[#allocation5 + $0xf8] sm:$0xff]
        %v611 = vld [vmem:[#allocation5 + $0x100] sm:$0xff]
        %v612 = vld [vmem:[#allocation5 + $0x108] sm:$0xff]
        %v613 = vld [vmem:[#allocation5 + $0x110] sm:$0xff]
        %v614 = vld [vmem:[#allocation5 + $0x118] sm:$0xff]
        %v615 = vld [vmem:[#allocation5 + $0x120] sm:$0xff]
        %v616 = vld [vmem:[#allocation5 + $0x128] sm:$0xff]
        %v617 = vld [vmem:[#allocation5 + $0x130] sm:$0xff]
        %v618 = vld [vmem:[#allocation5 + $0x138] sm:$0xff]
        %v619 = vld [vmem:[#allocation5 + $0x140] sm:$0xff]
        %v620 = vld [vmem:[#allocation5 + $0x148] sm:$0xff]
        %v621 = vld [vmem:[#allocation5 + $0x150] sm:$0xff]
        %v622 = vld [vmem:[#allocation5 + $0x158] sm:$0xff]
        %v623 = vld [vmem:[#allocation5 + $0x160] sm:$0xff]
        %v624 = vld [vmem:[#allocation5 + $0x168] sm:$0xff]
        %v625 = vld [vmem:[#allocation5 + $0x170] sm:$0xff]
        %v626 = vld [vmem:[#allocation5 + $0x178] sm:$0xff]
        %v627 = vld [vmem:[#allocation5 + $0x180] sm:$0xff]
        %v628 = vld [vmem:[#allocation5 + $0x188] sm:$0xff]
        %v629 = vld [vmem:[#allocation5 + $0x190] sm:$0xff]
        %v630 = vld [vmem:[#allocation5 + $0x198] sm:$0xff]
        %v631 = vld [vmem:[#allocation5 + $0x1a0] sm:$0xff]
        %v632 = vld [vmem:[#allocation5 + $0x1a8] sm:$0xff]
        %v633 = vld [vmem:[#allocation5 + $0x1b0] sm:$0xff]
        %v634 = vld [vmem:[#allocation5 + $0x1b8] sm:$0xff]
        %v635 = vld [vmem:[#allocation5 + $0x1c0] sm:$0xff]
        %v636 = vld [vmem:[#allocation5 + $0x1c8] sm:$0xff]
        %v637 = vld [vmem:[#allocation5 + $0x1d0] sm:$0xff]
        %v638 = vld [vmem:[#allocation5 + $0x1d8] sm:$0xff]
        %v639 = vld [vmem:[#allocation5 + $0x1e0] sm:$0xff]
        %v640 = vld [vmem:[#allocation5 + $0x1e8] sm:$0xff]
        %v641 = vld [vmem:[#allocation5 + $0x1f0] sm:$0xff]
        %v642 = vld [vmem:[#allocation5 + $0x1f8] sm:$0xff]
        %v643 = vld [vmem:[#allocation5 + $0x200] sm:$0xff]
        %v644 = vld [vmem:[#allocation5 + $0x208] sm:$0xff]
        %v645 = vld [vmem:[#allocation5 + $0x210] sm:$0xff]
        %v646 = vld [vmem:[#allocation5 + $0x218] sm:$0xff]
        %v647 = vld [vmem:[#allocation5 + $0x220] sm:$0xff]
        %v648 = vld [vmem:[#allocation5 + $0x228] sm:$0xff]
        %v649 = vld [vmem:[#allocation5 + $0x230] sm:$0xff]
        %v650 = vld [vmem:[#allocation5 + $0x238] sm:$0xff]
        %v651 = vld [vmem:[#allocation5 + $0x240] sm:$0xff]
        %v652 = vld [vmem:[#allocation5 + $0x248] sm:$0xff]
        %v653 = vld [vmem:[#allocation5 + $0x250] sm:$0xff]
        %v654 = vld [vmem:[#allocation5 + $0x258] sm:$0xff]
        %v655 = vld [vmem:[#allocation5 + $0x260] sm:$0xff]
        %v656 = vld [vmem:[#allocation5 + $0x268] sm:$0xff]
        %v657 = vld [vmem:[#allocation5 + $0x270] sm:$0xff]
        %v658 = vld [vmem:[#allocation5 + $0x278] sm:$0xff]
        %v659 = vld [vmem:[%s2] sm:$0x1]
        %v661 = vperm.slane %v659, 0
        %663 = vmatpush.msra.mxu0 %v594
        %664 = vmatpush.msra.mxu0 %v593
        %665 = vmatpush.msra.mxu0 %v592
        %666 = vmatpush.msra.mxu0 %v591
        %667 = vmatpush.msra.mxu0 %v590
        %668 = vmatpush.msra.mxu0 %v589
        %669 = vmatpush.msra.mxu0 %v588
        %670 = vmatpush.msra.mxu0 %v587
        %671 = vmatpush.msra.mxu0 %v586
        %672 = vmatpush.msra.mxu0 %v585
        %673 = vmatpush.msra.mxu0 %v584
        %674 = vmatpush.msra.mxu0 %v583
        %675 = vmatpush.msra.mxu0 %v582
        %676 = vmatpush.msra.mxu0 %v581
        %677 = vmatpush.msra.mxu0 %v580
        %678 = vmatpush.msra.mxu0 %v579
        %679 = vmatmul.f32.gmra.mxu0 %v278
        %v680 = vpop.f32.mrf.mxu0
        %v681 = vadd.f32 %v661, %v680
        %682 = vmatmul.f32.gmra.mxu0 %v279
        %v683 = vpop.f32.mrf.mxu0
        %v684 = vadd.f32 %v661, %v683
        %685 = vmatmul.f32.gmra.mxu0 %v280
        %v686 = vpop.f32.mrf.mxu0
        %v687 = vadd.f32 %v661, %v686
        %688 = vmatmul.f32.gmra.mxu0 %v281
        %v689 = vpop.f32.mrf.mxu0
        %v690 = vadd.f32 %v661, %v689
        %691 = vmatmul.f32.gmra.mxu0 %v282
        %v692 = vpop.f32.mrf.mxu0
        %v693 = vadd.f32 %v661, %v692
        %694 = vmatmul.f32.gmra.mxu0 %v283
        %v695 = vpop.f32.mrf.mxu0
        %v696 = vadd.f32 %v661, %v695
        %697 = vmatmul.f32.gmra.mxu0 %v284
        %v698 = vpop.f32.mrf.mxu0
        %v699 = vadd.f32 %v661, %v698
        %700 = vmatmul.f32.gmra.mxu0 %v285
        %v701 = vpop.f32.mrf.mxu0
        %v702 = vadd.f32 %v661, %v701
        %703 = vdwg.mxu0
        %704 = vmatpush.msra.mxu0 %v610
        %705 = vmatpush.msra.mxu0 %v609
        %706 = vmatpush.msra.mxu0 %v608
        %707 = vmatpush.msra.mxu0 %v607
        %708 = vmatpush.msra.mxu0 %v606
        %709 = vmatpush.msra.mxu0 %v605
        %710 = vmatpush.msra.mxu0 %v604
        %711 = vmatpush.msra.mxu0 %v603
        %712 = vmatpush.msra.mxu0 %v602
        %713 = vmatpush.msra.mxu0 %v601
        %714 = vmatpush.msra.mxu0 %v600
        %715 = vmatpush.msra.mxu0 %v599
        %716 = vmatpush.msra.mxu0 %v598
        %717 = vmatpush.msra.mxu0 %v597
        %718 = vmatpush.msra.mxu0 %v596
        %719 = vmatpush.msra.mxu0 %v595
        %720 = vmatmul.f32.gmra.mxu0 %v473
        %v721 = vpop.f32.mrf.mxu0
        %v722 = vadd.f32 %v681, %v721
        %723 = vmatmul.f32.gmra.mxu0 %v474
        %v724 = vpop.f32.mrf.mxu0
        %v725 = vadd.f32 %v684, %v724
        %726 = vmatmul.f32.gmra.mxu0 %v475
        %v727 = vpop.f32.mrf.mxu0
        %v728 = vadd.f32 %v687, %v727
        %729 = vmatmul.f32.gmra.mxu0 %v476
        %v730 = vpop.f32.mrf.mxu0
        %v731 = vadd.f32 %v690, %v730
        %732 = vmatmul.f32.gmra.mxu0 %v477
        %v733 = vpop.f32.mrf.mxu0
        %v734 = vadd.f32 %v693, %v733
        %735 = vmatmul.f32.gmra.mxu0 %v478
        %v736 = vpop.f32.mrf.mxu0
        %v737 = vadd.f32 %v696, %v736
        %738 = vmatmul.f32.gmra.mxu0 %v479
        %v739 = vpop.f32.mrf.mxu0
        %v740 = vadd.f32 %v699, %v739
        %741 = vmatmul.f32.gmra.mxu0 %v480
        %v742 = vpop.f32.mrf.mxu0
        %v743 = vadd.f32 %v702, %v742
        %744 = vdwg.mxu0
        %745 = vmatpush.msra.mxu0 %v626
        %746 = vmatpush.msra.mxu0 %v625
        %747 = vmatpush.msra.mxu0 %v624
        %748 = vmatpush.msra.mxu0 %v623
        %749 = vmatpush.msra.mxu0 %v622
        %750 = vmatpush.msra.mxu0 %v621
        %751 = vmatpush.msra.mxu0 %v620
        %752 = vmatpush.msra.mxu0 %v619
        %753 = vmatpush.msra.mxu0 %v618
        %754 = vmatpush.msra.mxu0 %v617
        %755 = vmatpush.msra.mxu0 %v616
        %756 = vmatpush.msra.mxu0 %v615
        %757 = vmatpush.msra.mxu0 %v614
        %758 = vmatpush.msra.mxu0 %v613
        %759 = vmatpush.msra.mxu0 %v612
        %760 = vmatpush.msra.mxu0 %v611
        %761 = vmatmul.f32.gmra.mxu0 %v523
        %v762 = vpop.f32.mrf.mxu0
        %v763 = vadd.f32 %v722, %v762
        %764 = vmatmul.f32.gmra.mxu0 %v524
        %v765 = vpop.f32.mrf.mxu0
        %v766 = vadd.f32 %v725, %v765
        %767 = vmatmul.f32.gmra.mxu0 %v525
        %v768 = vpop.f32.mrf.mxu0
        %v769 = vadd.f32 %v728, %v768
        %770 = vmatmul.f32.gmra.mxu0 %v526
        %v771 = vpop.f32.mrf.mxu0
        %v772 = vadd.f32 %v731, %v771
        %773 = vmatmul.f32.gmra.mxu0 %v527
        %v774 = vpop.f32.mrf.mxu0
        %v775 = vadd.f32 %v734, %v774
        %776 = vmatmul.f32.gmra.mxu0 %v528
        %v777 = vpop.f32.mrf.mxu0
        %v778 = vadd.f32 %v737, %v777
        %779 = vmatmul.f32.gmra.mxu0 %v529
        %v780 = vpop.f32.mrf.mxu0
        %v781 = vadd.f32 %v740, %v780
        %782 = vmatmul.f32.gmra.mxu0 %v530
        %v783 = vpop.f32.mrf.mxu0
        %v784 = vadd.f32 %v743, %v783
        %785 = vdwg.mxu0
        %786 = vmatpush.msra.mxu0 %v642
        %787 = vmatpush.msra.mxu0 %v641
        %788 = vmatpush.msra.mxu0 %v640
        %789 = vmatpush.msra.mxu0 %v639
        %790 = vmatpush.msra.mxu0 %v638
        %791 = vmatpush.msra.mxu0 %v637
        %792 = vmatpush.msra.mxu0 %v636
        %793 = vmatpush.msra.mxu0 %v635
        %794 = vmatpush.msra.mxu0 %v634
        %795 = vmatpush.msra.mxu0 %v633
        %796 = vmatpush.msra.mxu0 %v632
        %797 = vmatpush.msra.mxu0 %v631
        %798 = vmatpush.msra.mxu0 %v630
        %799 = vmatpush.msra.mxu0 %v629
        %800 = vmatpush.msra.mxu0 %v628
        %801 = vmatpush.msra.mxu0 %v627
        %802 = vmatmul.f32.gmra.mxu0 %v547
        %v803 = vpop.f32.mrf.mxu0
        %v804 = vadd.f32 %v763, %v803
        %805 = vmatmul.f32.gmra.mxu0 %v548
        %v806 = vpop.f32.mrf.mxu0
        %v807 = vadd.f32 %v766, %v806
        %808 = vmatmul.f32.gmra.mxu0 %v549
        %v809 = vpop.f32.mrf.mxu0
        %v810 = vadd.f32 %v769, %v809
        %811 = vmatmul.f32.gmra.mxu0 %v550
        %v812 = vpop.f32.mrf.mxu0
        %v813 = vadd.f32 %v772, %v812
        %814 = vmatmul.f32.gmra.mxu0 %v551
        %v815 = vpop.f32.mrf.mxu0
        %v816 = vadd.f32 %v775, %v815
        %817 = vmatmul.f32.gmra.mxu0 %v552
        %v818 = vpop.f32.mrf.mxu0
        %v819 = vadd.f32 %v778, %v818
        %820 = vmatmul.f32.gmra.mxu0 %v553
        %v821 = vpop.f32.mrf.mxu0
        %v822 = vadd.f32 %v781, %v821
        %823 = vmatmul.f32.gmra.mxu0 %v554
        %v824 = vpop.f32.mrf.mxu0
        %v825 = vadd.f32 %v784, %v824
        %826 = vdwg.mxu0
        %827 = vmatpush.msra.mxu0 %v658
        %828 = vmatpush.msra.mxu0 %v657
        %829 = vmatpush.msra.mxu0 %v656
        %830 = vmatpush.msra.mxu0 %v655
        %831 = vmatpush.msra.mxu0 %v654
        %832 = vmatpush.msra.mxu0 %v653
        %833 = vmatpush.msra.mxu0 %v652
        %834 = vmatpush.msra.mxu0 %v651
        %835 = vmatpush.msra.mxu0 %v650
        %836 = vmatpush.msra.mxu0 %v649
        %837 = vmatpush.msra.mxu0 %v648
        %838 = vmatpush.msra.mxu0 %v647
        %839 = vmatpush.msra.mxu0 %v646
        %840 = vmatpush.msra.mxu0 %v645
        %841 = vmatpush.msra.mxu0 %v644
        %842 = vmatpush.msra.mxu0 %v643
        %843 = vmatmul.f32.gmra.mxu0 %v571
        %v844 = vpop.f32.mrf.mxu0
        %v845 = vadd.f32 %v804, %v844
        %846 = vmatmul.f32.gmra.mxu0 %v572
        %v847 = vpop.f32.mrf.mxu0
        %v848 = vadd.f32 %v807, %v847
        %849 = vmatmul.f32.gmra.mxu0 %v573
        %v850 = vpop.f32.mrf.mxu0
        %v851 = vadd.f32 %v810, %v850
        %852 = vmatmul.f32.gmra.mxu0 %v574
        %v853 = vpop.f32.mrf.mxu0
        %v854 = vadd.f32 %v813, %v853
        %855 = vmatmul.f32.gmra.mxu0 %v575
        %v856 = vpop.f32.mrf.mxu0
        %v857 = vadd.f32 %v816, %v856
        %858 = vmatmul.f32.gmra.mxu0 %v576
        %v859 = vpop.f32.mrf.mxu0
        %v860 = vadd.f32 %v819, %v859
        %861 = vmatmul.f32.gmra.mxu0 %v577
        %v862 = vpop.f32.mrf.mxu0
        %v863 = vadd.f32 %v822, %v862
        %864 = vmatmul.f32.gmra.mxu0 %v578
        %v865 = vpop.f32.mrf.mxu0
        %v866 = vadd.f32 %v825, %v865
        %867 = vdwg.mxu0
        %v868 = vmax.f32 %v845, 0.0
        %v869 = vmax.f32 %v848, 0.0
        %v870 = vmax.f32 %v851, 0.0
        %v871 = vmax.f32 %v854, 0.0
        %v872 = vmax.f32 %v857, 0.0
        %v873 = vmax.f32 %v860, 0.0
        %v874 = vmax.f32 %v863, 0.0
        %v875 = vmax.f32 %v866, 0.0
        %v877 = vrot.slane %v875, 7
        %v886 = vrot.slane %v868, 7
        %v887 = vrot.slane %v869, 7
        %v888 = vsel %vm433, %v886, %v887
        %v889 = vrot.slane %v870, 7
        %v890 = vsel %vm433, %v887, %v889
        %v891 = vrot.slane %v871, 7
        %v892 = vsel %vm433, %v889, %v891
        %v893 = vrot.slane %v872, 7
        %v894 = vsel %vm433, %v891, %v893
        %v895 = vrot.slane %v873, 7
        %v896 = vsel %vm433, %v893, %v895
        %v897 = vrot.slane %v874, 7
        %v898 = vsel %vm433, %v895, %v897
        %v899 = vsel %vm433, %v897, %v877
        %v908 = vsel %vm433, %v877, %v886
        %v909 = vsel %vm465, %v908, 0.0
        %v910 = vsel %vm466, %v888, 0.0
        %v911 = vsel %vm467, %v890, 0.0
        %v912 = vsel %vm468, %v892, 0.0
        %v913 = vsel %vm469, %v894, 0.0
        %v914 = vsel %vm470, %v896, 0.0
        %v915 = vsel %vm471, %v898, 0.0
        %v916 = vsel %vm472, %v899, 0.0
        %v917 = vrot.slane %v868, 1
        %v918 = vrot.slane %v869, 1
        %v919 = vsel %vm481, %v917, %v918
        %v920 = vrot.slane %v870, 1
        %v921 = vsel %vm481, %v918, %v920
        %v922 = vrot.slane %v871, 1
        %v923 = vsel %vm481, %v920, %v922
        %v924 = vrot.slane %v872, 1
        %v925 = vsel %vm481, %v922, %v924
        %v926 = vrot.slane %v873, 1
        %v927 = vsel %vm481, %v924, %v926
        %v928 = vrot.slane %v874, 1
        %v929 = vsel %vm481, %v926, %v928
        %v930 = vrot.slane %v875, 1
        %v931 = vsel %vm481, %v928, %v930
        %v941 = vsel %vm481, %v930, %v917
        %v942 = vsel %vm515, %v919, 0.0
        %v943 = vsel %vm516, %v921, 0.0
        %v944 = vsel %vm517, %v923, 0.0
        %v945 = vsel %vm518, %v925, 0.0
        %v946 = vsel %vm519, %v927, 0.0
        %v947 = vsel %vm520, %v929, 0.0
        %v948 = vsel %vm521, %v931, 0.0
        %v949 = vsel %vm522, %v941, 0.0
        %v950 = vld [vmem:[#allocation7] sm:$0xff]
        %v951 = vld [vmem:[#allocation7 + $0x8] sm:$0xff]
        %v952 = vld [vmem:[#allocation7 + $0x10] sm:$0xff]
        %v953 = vld [vmem:[#allocation7 + $0x18] sm:$0xff]
        %v954 = vld [vmem:[#allocation7 + $0x20] sm:$0xff]
        %v955 = vld [vmem:[#allocation7 + $0x28] sm:$0xff]
        %v956 = vld [vmem:[#allocation7 + $0x30] sm:$0xff]
        %v957 = vld [vmem:[#allocation7 + $0x38] sm:$0xff]
        %v958 = vld [vmem:[#allocation7 + $0x40] sm:$0xff]
        %v959 = vld [vmem:[#allocation7 + $0x48] sm:$0xff]
        %v960 = vld [vmem:[#allocation7 + $0x50] sm:$0xff]
        %v961 = vld [vmem:[#allocation7 + $0x58] sm:$0xff]
        %v962 = vld [vmem:[#allocation7 + $0x60] sm:$0xff]
        %v963 = vld [vmem:[#allocation7 + $0x68] sm:$0xff]
        %v964 = vld [vmem:[#allocation7 + $0x70] sm:$0xff]
        %v965 = vld [vmem:[#allocation7 + $0x78] sm:$0xff]
        %v966 = vld [vmem:[#allocation7 + $0x80] sm:$0xff]
        %v967 = vld [vmem:[#allocation7 + $0x88] sm:$0xff]
        %v968 = vld [vmem:[#allocation7 + $0x90] sm:$0xff]
        %v969 = vld [vmem:[#allocation7 + $0x98] sm:$0xff]
        %v970 = vld [vmem:[#allocation7 + $0xa0] sm:$0xff]
        %v971 = vld [vmem:[#allocation7 + $0xa8] sm:$0xff]
        %v972 = vld [vmem:[#allocation7 + $0xb0] sm:$0xff]
        %v973 = vld [vmem:[#allocation7 + $0xb8] sm:$0xff]
        %v974 = vld [vmem:[#allocation7 + $0xc0] sm:$0xff]
        %v975 = vld [vmem:[#allocation7 + $0xc8] sm:$0xff]
        %v976 = vld [vmem:[#allocation7 + $0xd0] sm:$0xff]
        %v977 = vld [vmem:[#allocation7 + $0xd8] sm:$0xff]
        %v978 = vld [vmem:[#allocation7 + $0xe0] sm:$0xff]
        %v979 = vld [vmem:[#allocation7 + $0xe8] sm:$0xff]
        %v980 = vld [vmem:[#allocation7 + $0xf0] sm:$0xff]
        %v981 = vld [vmem:[#allocation7 + $0xf8] sm:$0xff]
        %v982 = vld [vmem:[#allocation7 + $0x100] sm:$0xff]
        %v983 = vld [vmem:[#allocation7 + $0x108] sm:$0xff]
        %v984 = vld [vmem:[#allocation7 + $0x110] sm:$0xff]
        %v985 = vld [vmem:[#allocation7 + $0x118] sm:$0xff]
        %v986 = vld [vmem:[#allocation7 + $0x120] sm:$0xff]
        %v987 = vld [vmem:[#allocation7 + $0x128] sm:$0xff]
        %v988 = vld [vmem:[#allocation7 + $0x130] sm:$0xff]
        %v989 = vld [vmem:[#allocation7 + $0x138] sm:$0xff]
        %v990 = vld [vmem:[#allocation7 + $0x140] sm:$0xff]
        %v991 = vld [vmem:[#allocation7 + $0x148] sm:$0xff]
        %v992 = vld [vmem:[#allocation7 + $0x150] sm:$0xff]
        %v993 = vld [vmem:[#allocation7 + $0x158] sm:$0xff]
        %v994 = vld [vmem:[#allocation7 + $0x160] sm:$0xff]
        %v995 = vld [vmem:[#allocation7 + $0x168] sm:$0xff]
        %v996 = vld [vmem:[#allocation7 + $0x170] sm:$0xff]
        %v997 = vld [vmem:[#allocation7 + $0x178] sm:$0xff]
        %v998 = vld [vmem:[%s4] sm:$0x1]
        %v1000 = vperm.slane %v998, 0
        %1002 = vmatpush.msra.mxu0 %v965
        %1003 = vmatpush.msra.mxu0 %v964
        %1004 = vmatpush.msra.mxu0 %v963
        %1005 = vmatpush.msra.mxu0 %v962
        %1006 = vmatpush.msra.mxu0 %v961
        %1007 = vmatpush.msra.mxu0 %v960
        %1008 = vmatpush.msra.mxu0 %v959
        %1009 = vmatpush.msra.mxu0 %v958
        %1010 = vmatpush.msra.mxu0 %v957
        %1011 = vmatpush.msra.mxu0 %v956
        %1012 = vmatpush.msra.mxu0 %v955
        %1013 = vmatpush.msra.mxu0 %v954
        %1014 = vmatpush.msra.mxu0 %v953
        %1015 = vmatpush.msra.mxu0 %v952
        %1016 = vmatpush.msra.mxu0 %v951
        %1017 = vmatpush.msra.mxu0 %v950
        %1018 = vmatmul.f32.gmra.mxu0 %v868
        %v1019 = vpop.f32.mrf.mxu0
        %v1020 = vadd.f32 %v1000, %v1019
        %1021 = vmatmul.f32.gmra.mxu0 %v869
        %v1022 = vpop.f32.mrf.mxu0
        %v1023 = vadd.f32 %v1000, %v1022
        %1024 = vmatmul.f32.gmra.mxu0 %v870
        %v1025 = vpop.f32.mrf.mxu0
        %v1026 = vadd.f32 %v1000, %v1025
        %1027 = vmatmul.f32.gmra.mxu0 %v871
        %v1028 = vpop.f32.mrf.mxu0
        %v1029 = vadd.f32 %v1000, %v1028
        %1030 = vmatmul.f32.gmra.mxu0 %v872
        %v1031 = vpop.f32.mrf.mxu0
        %v1032 = vadd.f32 %v1000, %v1031
        %1033 = vmatmul.f32.gmra.mxu0 %v873
        %v1034 = vpop.f32.mrf.mxu0
        %v1035 = vadd.f32 %v1000, %v1034
        %1036 = vmatmul.f32.gmra.mxu0 %v874
        %v1037 = vpop.f32.mrf.mxu0
        %v1038 = vadd.f32 %v1000, %v1037
        %1039 = vmatmul.f32.gmra.mxu0 %v875
        %v1040 = vpop.f32.mrf.mxu0
        %v1041 = vadd.f32 %v1000, %v1040
        %1042 = vdwg.mxu0
        %1043 = vmatpush.msra.mxu0 %v981
        %1044 = vmatpush.msra.mxu0 %v980
        %1045 = vmatpush.msra.mxu0 %v979
        %1046 = vmatpush.msra.mxu0 %v978
        %1047 = vmatpush.msra.mxu0 %v977
        %1048 = vmatpush.msra.mxu0 %v976
        %1049 = vmatpush.msra.mxu0 %v975
        %1050 = vmatpush.msra.mxu0 %v974
        %1051 = vmatpush.msra.mxu0 %v973
        %1052 = vmatpush.msra.mxu0 %v972
        %1053 = vmatpush.msra.mxu0 %v971
        %1054 = vmatpush.msra.mxu0 %v970
        %1055 = vmatpush.msra.mxu0 %v969
        %1056 = vmatpush.msra.mxu0 %v968
        %1057 = vmatpush.msra.mxu0 %v967
        %1058 = vmatpush.msra.mxu0 %v966
        %1059 = vmatmul.f32.gmra.mxu0 %v909
        %v1060 = vpop.f32.mrf.mxu0
        %v1061 = vadd.f32 %v1020, %v1060
        %1062 = vmatmul.f32.gmra.mxu0 %v910
        %v1063 = vpop.f32.mrf.mxu0
        %v1064 = vadd.f32 %v1023, %v1063
        %1065 = vmatmul.f32.gmra.mxu0 %v911
        %v1066 = vpop.f32.mrf.mxu0
        %v1067 = vadd.f32 %v1026, %v1066
        %1068 = vmatmul.f32.gmra.mxu0 %v912
        %v1069 = vpop.f32.mrf.mxu0
        %v1070 = vadd.f32 %v1029, %v1069
        %1071 = vmatmul.f32.gmra.mxu0 %v913
        %v1072 = vpop.f32.mrf.mxu0
        %v1073 = vadd.f32 %v1032, %v1072
        %1074 = vmatmul.f32.gmra.mxu0 %v914
        %v1075 = vpop.f32.mrf.mxu0
        %v1076 = vadd.f32 %v1035, %v1075
        %1077 = vmatmul.f32.gmra.mxu0 %v915
        %v1078 = vpop.f32.mrf.mxu0
        %v1079 = vadd.f32 %v1038, %v1078
        %1080 = vmatmul.f32.gmra.mxu0 %v916
        %v1081 = vpop.f32.mrf.mxu0
        %v1082 = vadd.f32 %v1041, %v1081
        %1083 = vdwg.mxu0
        %1084 = vmatpush.msra.mxu0 %v997
        %1085 = vmatpush.msra.mxu0 %v996
        %1086 = vmatpush.msra.mxu0 %v995
        %1087 = vmatpush.msra.mxu0 %v994
        %1088 = vmatpush.msra.mxu0 %v993
        %1089 = vmatpush.msra.mxu0 %v992
        %1090 = vmatpush.msra.mxu0 %v991
        %1091 = vmatpush.msra.mxu0 %v990
        %1092 = vmatpush.msra.mxu0 %v989
        %1093 = vmatpush.msra.mxu0 %v988
        %1094 = vmatpush.msra.mxu0 %v987
        %1095 = vmatpush.msra.mxu0 %v986
        %1096 = vmatpush.msra.mxu0 %v985
        %1097 = vmatpush.msra.mxu0 %v984
        %1098 = vmatpush.msra.mxu0 %v983
        %1099 = vmatpush.msra.mxu0 %v982
        %1100 = vmatmul.f32.gmra.mxu0 %v942
        %v1101 = vpop.f32.mrf.mxu0
        %v1102 = vadd.f32 %v1061, %v1101
        %1103 = vmatmul.f32.gmra.mxu0 %v943
        %v1104 = vpop.f32.mrf.mxu0
        %v1105 = vadd.f32 %v1064, %v1104
        %1106 = vmatmul.f32.gmra.mxu0 %v944
        %v1107 = vpop.f32.mrf.mxu0
        %v1108 = vadd.f32 %v1067, %v1107
        %1109 = vmatmul.f32.gmra.mxu0 %v945
        %v1110 = vpop.f32.mrf.mxu0
        %v1111 = vadd.f32 %v1070, %v1110
        %1112 = vmatmul.f32.gmra.mxu0 %v946
        %v1113 = vpop.f32.mrf.mxu0
        %v1114 = vadd.f32 %v1073, %v1113
        %1115 = vmatmul.f32.gmra.mxu0 %v947
        %v1116 = vpop.f32.mrf.mxu0
        %v1117 = vadd.f32 %v1076, %v1116
        %1118 = vmatmul.f32.gmra.mxu0 %v948
        %v1119 = vpop.f32.mrf.mxu0
        %v1120 = vadd.f32 %v1079, %v1119
        %1121 = vmatmul.f32.gmra.mxu0 %v949
        %v1122 = vpop.f32.mrf.mxu0
        %v1123 = vadd.f32 %v1082, %v1122
        %1124 = vdwg.mxu0
        %1125 = vst [vmem:[%s277] sm:$0xff] %v1102
        %1126 = vst [vmem:[%s277 + $0x8] sm:$0xff] %v1105
        %1127 = vst [vmem:[%s277 + $0x10] sm:$0xff] %v1108
        %1128 = vst [vmem:[%s277 + $0x18] sm:$0xff] %v1111
        %1129 = vst [vmem:[%s277 + $0x20] sm:$0xff] %v1114
        %1130 = vst [vmem:[%s277 + $0x28] sm:$0xff] %v1117
        %1131 = vst [vmem:[%s277 + $0x30] sm:$0xff] %v1120
        %1132 = vst [vmem:[%s277 + $0x38] sm:$0xff] %v1123
        %s1133 = sand.u32 %s141, 1
        %s1134 = scalar_lea.sflag [#allocation4], %s1133
        %s1135 = sand.u32 %s141, 1
        %s1136 = smul.addr %s1135, 64
        %s1137 = scalar_lea.vmem [#allocation8], %s1136
        // Predicated region
        $region53: #{tpu_custom_call.1} parent=39 // pred_check
          %p1138 = pneg %p151
        $region54: #{tpu_custom_call.1} parent=39 // pred_check_branch
          %1140 = sbr.rel (%p1138) target = $region56
        $region55: #{tpu_custom_call.1} parent=39 // pred_region
          %1142 = vsyncadd %s1134, 0
          %s1143 = smul.addr %s23, 8
          %s1144 = smul.addr %s1143, 8
          %s1145 = scalar_lea.hbm %s5, %s1144
          %s1146 = sshll.u32 %s1137, 4
          %s1147 = int_to_ptr.vmem [resolvable:$true] %s1146
          %s1148 = sshll.u32 %s1145, 4
          %s1149 = int_to_ptr.hbm [resolvable:$true] %s1148
          %1154 = dma.vmem_to_hbm [thread:$0]  %s1147, 1024, %s1149, %s1134, 128, 128, 8
        $region56: #{tpu_custom_call.1} parent=39 // pred_fallthru
          _
      $region40: #{tpu_custom_call.1} parent=5 // pred_fallthru
        _
      %p1155 = scmp.le.s32.totalorder 2, %s18
      // Predicated region
      $region57: #{tpu_custom_call.1} parent=5 // pred_check
        %p1156 = pneg %p1155
      $region58: #{tpu_custom_call.1} parent=5 // pred_check_branch
        %1158 = sbr.rel (%p1156) target = $region60
      $region59: #{tpu_custom_call.1} parent=5 // pred_region
        %s1159 = ssub.s32 %s18, 2
        // Predicated region
        $region61: #{tpu_custom_call.1} parent=59 // pred_check
          %p1160 = pneg %p157
        $region62: #{tpu_custom_call.1} parent=59 // pred_check_branch
          %1162 = sbr.rel (%p1160) target = $region64
        $region63: #{tpu_custom_call.1} parent=59 // pred_region
          %s1163 = sand.u32 %s142, 1
          %s1164 = scalar_lea.sflag [#allocation4], %s1163
          %s1165 = sand.u32 %s142, 1
          %s1166 = smul.addr %s1165, 64
          %s1167 = scalar_lea.vmem [#allocation8], %s1166
          %1169 = dma.done %s1164, 1024
        $region64: #{tpu_custom_call.1} parent=59 // pred_fallthru
          _
      $region60: #{tpu_custom_call.1} parent=5 // pred_fallthru
        _
    $region6: #{tpu_custom_call.1} parent=1 // loop_footer
      %s22 = sadd.s32 1, %s18
    $region7: #{tpu_custom_call.1} parent=1 // loop_footer_branch
      %17 = sbr.rel target = $region3
    $region8: #{tpu_custom_call.1} parent=1 // loop_exit
      _
    %1170 = vsyncpa [#allocation3], 1
    %s1171 = scalar_lea.sflag [#allocation3], 1
    %1172 = vsyncpa %s1171, 1
    %1173 = vsyncpa [#allocation6], 1
    %1174 = vsyncpa [#allocation4], 1
    %s1175 = scalar_lea.sflag [#allocation4], 1
    %1176 = vsyncpa %s1175, 1

</llo_original>
